<compile_context>
chip_gen: v6e
topology: v6e:2x2x1
jax: 0.10.0
libtpu: 0.0.40
codegen_flags: <defaults>
</compile_context>

<pallas_src>
import itertools

import jax
import jax.numpy as jnp
import numpy as np
from jax.experimental import pallas as pl
from jax.experimental.pallas import tpu as pltpu

EPS = 1e-5


def _round_up(v, m):
    return ((v + m - 1) // m) * m


def _pad2(a, d0, d1):
    p0 = d0 - a.shape[0]
    p1 = d1 - a.shape[1]
    if p0 or p1:
        a = jnp.pad(a, ((0, p0), (0, p1)))
    return a


# ---------------------------------------------------------------------------
# Pass 1: one fused MXU matmul over the flattened K*Cin contraction dim, plus
# per-tile BatchNorm partial statistics (sum, sum of squares) in the epilogue.
# Padded rows of g are exactly zero, so no masking is needed for the sums.
# ---------------------------------------------------------------------------
def _deconv_matmul_stats_kernel(g_ref, w_ref, y_ref, stats_ref):
    y = jnp.dot(g_ref[...], w_ref[...], preferred_element_type=jnp.float32)
    y_ref[...] = y.astype(y_ref.dtype)

    s = jnp.sum(y, axis=0, keepdims=True)        # [1, C]
    ss = jnp.sum(y * y, axis=0, keepdims=True)   # [1, C]
    row = jax.lax.broadcasted_iota(jnp.int32, stats_ref.shape, 0)
    stats_ref[...] = jnp.where(row == 0, s, jnp.where(row == 1, ss, 0.0))


# ---------------------------------------------------------------------------
# Pass 2: y * scale + shift, ReLU.  scale/shift fold mean/var/gamma/beta.
# ---------------------------------------------------------------------------
def _bn_relu_kernel(y_ref, scale_ref, shift_ref, o_ref):
    y = y_ref[...].astype(jnp.float32)
    out = jnp.maximum(y * scale_ref[...] + shift_ref[...], 0.0)
    o_ref[...] = out.astype(o_ref.dtype)


# ---------------------------------------------------------------------------
# Kernel-map construction (plain-JAX glue, outside the hot path).
# ---------------------------------------------------------------------------
def _build_kernel_map(coords, ks):
    """For each output point p and kernel offset d_k, the index of the input
    point at coordinate (p - d_k) plus a validity mask, as [N, K] arrays.
    Sort/searchsorted lookup: O(K N log N)."""
    r = ks // 2
    offsets = jnp.asarray(
        list(itertools.product(*([range(-r, r + 1)] * 3))), dtype=coords.dtype
    )                                                          # [K, 3]
    n = coords.shape[0]
    cmin = coords.min(axis=0)
    span = coords.max(axis=0) - cmin + 2 * r + 1               # per-dim key extent
    shifted = coords - cmin + r                                # [N, 3], >= r
    key = (shifted[:, 0] * span[1] + shifted[:, 1]) * span[2] + shifted[:, 2]
    order = jnp.argsort(key)
    sorted_key = key[order]

    tgt = shifted[:, None, :] - offsets[None, :, :]            # [N, K, 3], >= 0
    tgt_key = (tgt[..., 0] * span[1] + tgt[..., 1]) * span[2] + tgt[..., 2]
    pos = jnp.clip(jnp.searchsorted(sorted_key, tgt_key), 0, n - 1)
    valid = sorted_key[pos] == tgt_key                         # [N, K]
    idx = order[pos]                                           # [N, K]
    return idx, valid


def _build_kernel_map_bruteforce(coords, ks):
    """O(K N^2) reference kernel map (only to validate the sorted one)."""
    r = ks // 2
    offsets = jnp.asarray(
        list(itertools.product(*([range(-r, r + 1)] * 3))), dtype=coords.dtype
    )
    tgt = coords[None, :, :] - offsets[:, None, :]
    eq = jnp.all(tgt[:, :, None, :] == coords[None, None, :, :], axis=-1)
    return jnp.argmax(eq, axis=-1), jnp.any(eq, axis=-1)      # [K, N], [K, N]


# ---------------------------------------------------------------------------
# Public wrapper.
# ---------------------------------------------------------------------------
def basic_deconvolution_block(x, coords, weight, gamma, beta, ks=3,
                              compute_dtype=jnp.bfloat16, max_tile_n=2048):
    """x: [N, Cin] features, coords: [N, 3] unique integer voxel coords,
    weight: [K, Cin, Cout] (K = ks**3), gamma/beta: [Cout]."""
    n, cin = x.shape
    k, _, cout = weight.shape
    assert k == ks ** 3

    # ---- neighbor gather (plain-JAX glue), directly in [N, K, Cin] layout ----
    idx, valid = _build_kernel_map(coords, ks)                 # [N, K], [N, K]
    xg = x.astype(compute_dtype)
    zero = jnp.zeros((), compute_dtype)
    g = jnp.where(valid[:, :, None], xg[idx], zero)            # [N, K, Cin]
    g = g.reshape(n, k * cin)                                  # [N, K*Cin]
    w = weight.astype(compute_dtype).reshape(k * cin, cout)    # [K*Cin, Cout]

    # ---- lane/sublane-dense padding & tiling ----
    tile_n = min(_round_up(max(n, 1), 128), max_tile_n)        # multiple of 128
    n_pad = _round_up(n, tile_n)
    num_tiles = n_pad // tile_n
    kc_pad = _round_up(k * cin, 128)
    cout_pad = _round_up(cout, 128)

    g = _pad2(g, n_pad, kc_pad)
    w = _pad2(w, kc_pad, cout_pad)

    cparams = pltpu.CompilerParams(
        dimension_semantics=("parallel",),
        vmem_limit_bytes=32 * 1024 * 1024,
    )

    # ---- pass 1: tiled matmul + per-tile BN partial sums ----
    y, stats = pl.pallas_call(
        _deconv_matmul_stats_kernel,
        out_shape=(
            jax.ShapeDtypeStruct((n_pad, cout_pad), compute_dtype),
            jax.ShapeDtypeStruct((num_tiles * 8, cout_pad), jnp.float32),
        ),
        grid=(num_tiles,),
        in_specs=[
            pl.BlockSpec((tile_n, kc_pad), lambda i: (i, 0)),     # streamed
            pl.BlockSpec((kc_pad, cout_pad), lambda i: (0, 0)),   # resident
        ],
        out_specs=[
            pl.BlockSpec((tile_n, cout_pad), lambda i: (i, 0)),
            pl.BlockSpec((8, cout_pad), lambda i: (i, 0)),
        ],
        compiler_params=cparams,
    )(g, w)

    # ---- reduce partial stats -> BN scale / shift (tiny, plain JAX) ----
    stats = stats.reshape(num_tiles, 8, cout_pad)
    total = jnp.sum(stats[:, 0, :], axis=0)                    # [Cout_pad]
    total_sq = jnp.sum(stats[:, 1, :], axis=0)                 # [Cout_pad]
    inv_n = jnp.float32(1.0 / n)                               # biased var, n real rows
    mean = total * inv_n
    var = jnp.maximum(total_sq * inv_n - mean * mean, 0.0)
    inv_std = jax.lax.rsqrt(var + EPS)
    gamma_p = _pad2(gamma.reshape(1, cout).astype(jnp.float32), 1, cout_pad)
    beta_p = _pad2(beta.reshape(1, cout).astype(jnp.float32), 1, cout_pad)
    scale = gamma_p * inv_std[None, :]                         # [1, Cout_pad]
    shift = beta_p - mean[None, :] * scale                     # [1, Cout_pad]

    # ---- pass 2: normalize + ReLU ----
    out = pl.pallas_call(
        _bn_relu_kernel,
        out_shape=jax.ShapeDtypeStruct((n_pad, cout_pad), x.dtype),
        grid=(num_tiles,),
        in_specs=[
            pl.BlockSpec((tile_n, cout_pad), lambda i: (i, 0)),   # streamed y (bf16)
            pl.BlockSpec((1, cout_pad), lambda i: (0, 0)),        # resident
            pl.BlockSpec((1, cout_pad), lambda i: (0, 0)),        # resident
        ],
        out_specs=pl.BlockSpec((tile_n, cout_pad), lambda i: (i, 0)),
        compiler_params=cparams,
    )(y, scale, shift)

    return out[:n, :cout]


# ---------------------------------------------------------------------------
# Pure-JAX reference (same bf16 MXU-input quantization, f32 accumulation/BN),
# using the independently-built brute-force kernel map.
# ---------------------------------------------------------------------------
def _reference(x, coords, weight, gamma, beta, ks=3, compute_dtype=jnp.bfloat16):
    idx, valid = _build_kernel_map_bruteforce(coords, ks)      # [K, N]
    xg = x.astype(compute_dtype)
    g = jnp.where(valid[:, :, None], xg[idx], jnp.zeros((), compute_dtype))
    w = weight.astype(compute_dtype)
    y = jnp.einsum("knc,kcd->nd", g, w, preferred_element_type=jnp.float32)
    mean = jnp.mean(y, axis=0, keepdims=True)
    var = jnp.mean((y - mean) ** 2, axis=0, keepdims=True)
    y_hat = (y - mean) / jnp.sqrt(var + EPS)
    return jnp.maximum(y_hat * gamma[None, :] + beta[None, :], 0.0)


if __name__ == "__main__":
    key = jax.random.PRNGKey(0)
    k_coord, k_x, k_w, k_g, k_b = jax.random.split(key, 5)

    N, C_IN, C_OUT, KS = 64, 4, 8, 3
    K = KS ** 3

    # Unique integer voxel coordinates in an 8^3 grid (single batch).
    grid = jnp.asarray(
        list(itertools.product(range(8), range(8), range(8))), dtype=jnp.int32
    )
    sel = jax.random.choice(k_coord, grid.shape[0], shape=(N,), replace=False)
    coords = grid[sel]                                          # [N, 3]

    # Deterministic synthetic parameters (MinkowskiConvolution has no bias).
    x = jax.random.normal(k_x, (N, C_IN), dtype=jnp.float32)
    weight = 0.1 * jax.random.normal(k_w, (K, C_IN, C_OUT), dtype=jnp.float32)
    gamma = 1.0 + 0.1 * jax.random.normal(k_g, (C_OUT,), dtype=jnp.float32)
    beta = 0.1 * jax.random.normal(k_b, (C_OUT,), dtype=jnp.float32)

    out = basic_deconvolution_block(x, coords, weight, gamma, beta, ks=KS)
    out = jax.block_until_ready(out)

    ref = _reference(x, coords, weight, gamma, beta, ks=KS)
    np.testing.assert_allclose(np.asarray(out), np.asarray(ref),
                               rtol=1e-2, atol=5e-3)

    print("KERNEL_OK")
</pallas_src>

<mosaic_0001>
module attributes {stable_mosaic.version = 11 : i64} {
  func.func @_deconv_matmul_stats_kernel(%arg0: i32, %arg1: memref<128x128xbf16, #tpu.memory_space<vmem>>, %arg2: memref<128x128xbf16, #tpu.memory_space<vmem>>, %arg3: memref<128x128xbf16, #tpu.memory_space<vmem>>, %arg4: memref<8x128xf32, #tpu.memory_space<vmem>>) attributes {dimension_semantics = [#tpu.dimension_semantics<parallel>], iteration_bounds = array<i64: 1>, scalar_prefetch = 0 : i64, scratch_operands = 0 : i64, tpu.core_type = #tpu.core_type<tc>, window_params = [{transform_indices = @transform_0, window_bounds = array<i64: 128, 128>}, {pipeline_mode = #tpu.pipeline_mode<synchronous>, transform_indices = @transform_1, window_bounds = array<i64: 128, 128>}, {transform_indices = @transform_2, window_bounds = array<i64: 128, 128>}, {transform_indices = @transform_3, window_bounds = array<i64: 8, 128>}]} {
    %c0 = arith.constant 0 : index
    %c0_0 = arith.constant 0 : index
    %0 = vector.load %arg1[%c0, %c0_0] : memref<128x128xbf16, #tpu.memory_space<vmem>>, vector<128x128xbf16>
    %c0_1 = arith.constant 0 : index
    %c0_2 = arith.constant 0 : index
    %1 = vector.load %arg2[%c0_1, %c0_2] : memref<128x128xbf16, #tpu.memory_space<vmem>>, vector<128x128xbf16>
    %cst = arith.constant dense<0.000000e+00> : vector<128x128xf32>
    %2 = tpu.matmul %0, %1, %cst {dimension_numbers = #tpu.dot_dimension_numbers<[1], [0], [0], [1], [0, 0, 1, 1], [], []>} : vector<128x128xbf16>, vector<128x128xbf16>, vector<128x128xf32> -> vector<128x128xf32>
    %3 = arith.truncf %2 : vector<128x128xf32> to vector<128x128xbf16>
    %c0_3 = arith.constant 0 : index
    %c0_4 = arith.constant 0 : index
    %4 = vector.load %arg3[%c0_3, %c0_4] : memref<128x128xbf16, #tpu.memory_space<vmem>>, vector<128x128xbf16>
    tpu.vector_store %arg3[%c0_3, %c0_4], %3 {strides = array<i32>} : memref<128x128xbf16, #tpu.memory_space<vmem>>, vector<128x128xbf16>,
    %cst_5 = arith.constant dense<0.000000e+00> : vector<128xf32>
    %5 = vector.multi_reduction <add>, %2, %cst_5 [0] : vector<128x128xf32> to vector<128xf32>
    %6 = vector.shape_cast %5 : vector<128xf32> to vector<1x128xf32>
    %7 = arith.mulf %2, %2 : vector<128x128xf32>
    %cst_6 = arith.constant dense<0.000000e+00> : vector<128xf32>
    %8 = vector.multi_reduction <add>, %7, %cst_6 [0] : vector<128x128xf32> to vector<128xf32>
    %9 = vector.shape_cast %8 : vector<128xf32> to vector<1x128xf32>
    %10 = tpu.iota {dimensions = array<i32: 0>} : vector<8x128xi32>
    %c0_i32 = arith.constant 0 : i32
    %11 = vector.broadcast %c0_i32 : i32 to vector<8x128xi32>
    %12 = arith.cmpi eq, %10, %11 : vector<8x128xi32>
    %c1_i32 = arith.constant 1 : i32
    %13 = vector.broadcast %c1_i32 : i32 to vector<8x128xi32>
    %14 = arith.cmpi eq, %10, %13 : vector<8x128xi32>
    %cst_7 = arith.constant 0.000000e+00 : f32
    %15 = vector.shape_cast %9 : vector<1x128xf32> to vector<1x128xf32>
    %16 = vector.broadcast %15 : vector<1x128xf32> to vector<8x128xf32>
    %17 = vector.broadcast %cst_7 : f32 to vector<8x128xf32>
    %18 = arith.select %14, %16, %17 : vector<8x128xi1>, vector<8x128xf32>
    %19 = vector.shape_cast %6 : vector<1x128xf32> to vector<1x128xf32>
    %20 = vector.broadcast %19 : vector<1x128xf32> to vector<8x128xf32>
    %21 = arith.select %12, %20, %18 : vector<8x128xi1>, vector<8x128xf32>
    %c0_8 = arith.constant 0 : index
    %c0_9 = arith.constant 0 : index
    %22 = vector.load %arg4[%c0_8, %c0_9] : memref<8x128xf32, #tpu.memory_space<vmem>>, vector<8x128xf32>
    tpu.vector_store %arg4[%c0_8, %c0_9], %21 {strides = array<i32>} : memref<8x128xf32, #tpu.memory_space<vmem>>, vector<8x128xf32>,
    return
  }
  func.func @transform_0(%arg0: i32) -> (i32, i32) {
    %c0_i32 = arith.constant 0 : i32
    %c0_i32_0 = arith.constant 0 : i32
    return %arg0, %c0_i32 : i32, i32
  }
  func.func @transform_1(%arg0: i32) -> (i32, i32) {
    %c0_i32 = arith.constant 0 : i32
    %c0_i32_0 = arith.constant 0 : i32
    %c0_i32_1 = arith.constant 0 : i32
    return %c0_i32, %c0_i32_0 : i32, i32
  }
  func.func @transform_2(%arg0: i32) -> (i32, i32) {
    %c0_i32 = arith.constant 0 : i32
    %c0_i32_0 = arith.constant 0 : i32
    return %arg0, %c0_i32 : i32, i32
  }
  func.func @transform_3(%arg0: i32) -> (i32, i32) {
    %c0_i32 = arith.constant 0 : i32
    %c0_i32_0 = arith.constant 0 : i32
    return %arg0, %c0_i32 : i32, i32
  }
}

</mosaic_0001>

<llo_original>
// kernel: tpu_custom_call.1
$region0: #{tpu_custom_call.1}
  #allocation0 [shape = 'u32[]', space=smem, size = 0x4, offset = 0x4, fixed_abs, tag = 'smem constant byte address 0x4 - core index']
  #allocation1 [shape = 'u32[144,128]{1,0:T(1,128)}', space=vmem, size = 0x12000, scoped, tag = 'internal scratch']
  %s0 = inlined_call_operand.hbm [shape: bf16[128,128], index: 0, kind: input, shape index: {}]
  %s1 = inlined_call_operand.hbm [shape: bf16[128,128], index: 1, kind: input, shape index: {}]
  %s2 = inlined_call_operand.hbm [shape: bf16[128,128], index: 2, kind: output, shape index: {0}]
  %s3 = inlined_call_operand.hbm [shape: f32[8,128], index: 3, kind: output, shape index: {1}]
  %4 = xla_tuple %s2, %s3
  %s5 = sld [smem:[#allocation0]]
  $region34: #{tpu_custom_call.1} parent=0
    _
  %s7 = ssub.s32 1, %s5
  %s8 = scalar_select 0, %s7, %s5
  $region1: #{tpu_custom_call.1} parent=0
    #allocation2 [shape = 'u8[32768]{0}', space=vmem, size = 0x8000, scoped, tag = 'input window, operand 0, single buffered']
    #allocation3 [shape = 's32[1]{0}', space=sflag, size = 0x4, scoped, tag = 'scoped memory for tpu_custom_call.1']
    #allocation4 [shape = 's32[1]{0}', space=sflag, size = 0x4, scoped, tag = 'scoped memory for tpu_custom_call.1']
    #allocation5 [shape = 'u8[32768]{0}', space=vmem, size = 0x8000, scoped, tag = 'input window, operand 1, single buffered']
    #allocation6 [shape = 's32[1]{0}', space=sflag, size = 0x4, scoped, tag = 'scoped memory for tpu_custom_call.1']
    #allocation7 [shape = 'u8[32768]{0}', space=vmem, size = 0x8000, scoped, tag = 'output window, operand 0, single buffered']
    #allocation8 [shape = 'u8[4096]{0}', space=vmem, size = 0x1000, scoped, tag = 'output window, operand 1, single buffered']
    #allocation9 [shape = 's32[1]{0}', space=sflag, size = 0x4, scoped, tag = 'scoped memory for tpu_custom_call.1']
    %9 = vsyncpa [#allocation3], 0
    %10 = vsyncpa [#allocation6], 0
    %11 = vsyncpa [#allocation4], 0
    %12 = vsyncpa [#allocation9], 0
    // Predicated region
    $region2: #{tpu_custom_call.1} parent=1 // pred_check
      _
    $region3: #{tpu_custom_call.1} parent=1 // pred_check_branch
      %14 = sbr.rel (0) target = $region5
    $region4: #{tpu_custom_call.1} parent=1 // pred_region
      %s16 = ssub.s32 1024, 1024
      %17 = vsyncadd [#allocation3], %s16
      %s18 = sshll.u32 [#allocation2], 4
      %s19 = int_to_ptr.vmem [resolvable:$true] %s18
      %24 = dma.hbm_to_vmem [thread:$0]  %s0, 1024, %s19, [#allocation3], 64, 64, 4
    $region5: #{tpu_custom_call.1} parent=1 // pred_fallthru
      _
    // Predicated region
    $region6: #{tpu_custom_call.1} parent=1 // pred_check
      _
    $region7: #{tpu_custom_call.1} parent=1 // pred_check_branch
      %26 = sbr.rel (0) target = $region9
    $region8: #{tpu_custom_call.1} parent=1 // pred_region
      %s28 = ssub.s32 1024, 1024
      %29 = vsyncadd [#allocation6], %s28
      %s30 = sshll.u32 [#allocation5], 4
      %s31 = int_to_ptr.vmem [resolvable:$true] %s30
      %36 = dma.hbm_to_vmem [thread:$0]  %s1, 1024, %s31, [#allocation6], 64, 64, 4
    $region9: #{tpu_custom_call.1} parent=1 // pred_fallthru
      _
    // Predicated region
    $region10: #{tpu_custom_call.1} parent=1 // pred_check
      _
    $region11: #{tpu_custom_call.1} parent=1 // pred_check_branch
      %38 = sbr.rel (0) target = $region13
    $region12: #{tpu_custom_call.1} parent=1 // pred_region
      %39 = dma.done [#allocation3], 1024
    $region13: #{tpu_custom_call.1} parent=1 // pred_fallthru
      _
    // Predicated region
    $region14: #{tpu_custom_call.1} parent=1 // pred_check
      _
    $region15: #{tpu_custom_call.1} parent=1 // pred_check_branch
      %41 = sbr.rel (0) target = $region17
    $region16: #{tpu_custom_call.1} parent=1 // pred_region
      %42 = dma.done [#allocation6], 1024
    $region17: #{tpu_custom_call.1} parent=1 // pred_fallthru
      _
    %v44 = vld [vmem:[#allocation2] sm:$0xf]
    %v45 = vld [vmem:[#allocation2 + $0x4] sm:$0xf]
    %v46 = vld [vmem:[#allocation2 + $0x8] sm:$0xf]
    %v47 = vld [vmem:[#allocation2 + $0xc] sm:$0xf]
    %v48 = vld [vmem:[#allocation2 + $0x10] sm:$0xf]
    %v49 = vld [vmem:[#allocation2 + $0x14] sm:$0xf]
    %v50 = vld [vmem:[#allocation2 + $0x18] sm:$0xf]
    %v51 = vld [vmem:[#allocation2 + $0x1c] sm:$0xf]
    %v52 = vld [vmem:[#allocation2 + $0x20] sm:$0xf]
    %v53 = vld [vmem:[#allocation2 + $0x24] sm:$0xf]
    %v54 = vld [vmem:[#allocation2 + $0x28] sm:$0xf]
    %v55 = vld [vmem:[#allocation2 + $0x2c] sm:$0xf]
    %v56 = vld [vmem:[#allocation2 + $0x30] sm:$0xf]
    %v57 = vld [vmem:[#allocation2 + $0x34] sm:$0xf]
    %v58 = vld [vmem:[#allocation2 + $0x38] sm:$0xf]
    %v59 = vld [vmem:[#allocation2 + $0x3c] sm:$0xf]
    %v60 = vld [vmem:[#allocation5] sm:$0xf]
    %v61 = vld [vmem:[#allocation5 + $0x4] sm:$0xf]
    %v62 = vld [vmem:[#allocation5 + $0x8] sm:$0xf]
    %v63 = vld [vmem:[#allocation5 + $0xc] sm:$0xf]
    %v64 = vld [vmem:[#allocation5 + $0x10] sm:$0xf]
    %v65 = vld [vmem:[#allocation5 + $0x14] sm:$0xf]
    %v66 = vld [vmem:[#allocation5 + $0x18] sm:$0xf]
    %v67 = vld [vmem:[#allocation5 + $0x1c] sm:$0xf]
    %v68 = vld [vmem:[#allocation5 + $0x20] sm:$0xf]
    %v69 = vld [vmem:[#allocation5 + $0x24] sm:$0xf]
    %v70 = vld [vmem:[#allocation5 + $0x28] sm:$0xf]
    %v71 = vld [vmem:[#allocation5 + $0x2c] sm:$0xf]
    %v72 = vld [vmem:[#allocation5 + $0x30] sm:$0xf]
    %v73 = vld [vmem:[#allocation5 + $0x34] sm:$0xf]
    %v74 = vld [vmem:[#allocation5 + $0x38] sm:$0xf]
    %v75 = vld [vmem:[#allocation5 + $0x3c] sm:$0xf]
    %v92 = vunpack.c.l.b16 %v44
    %v93 = vunpack.c.l.b16 %v45
    %v94 = vunpack.c.l.b16 %v46
    %v95 = vunpack.c.l.b16 %v47
    %v96 = vunpack.c.l.b16 %v48
    %v97 = vunpack.c.l.b16 %v49
    %v98 = vunpack.c.l.b16 %v50
    %v99 = vunpack.c.l.b16 %v51
    %v100 = vunpack.c.l.b16 %v52
    %v101 = vunpack.c.l.b16 %v53
    %v102 = vunpack.c.l.b16 %v54
    %v103 = vunpack.c.l.b16 %v55
    %v104 = vunpack.c.l.b16 %v56
    %v105 = vunpack.c.l.b16 %v57
    %v106 = vunpack.c.l.b16 %v58
    %v107 = vunpack.c.l.b16 %v59
    %v108 = vpack.c.b16 %v93, %v92
    %v109 = vpack.c.b16 %v95, %v94
    %v110 = vpack.c.b16 %v97, %v96
    %v111 = vpack.c.b16 %v99, %v98
    %v112 = vpack.c.b16 %v101, %v100
    %v113 = vpack.c.b16 %v103, %v102
    %v114 = vpack.c.b16 %v105, %v104
    %v115 = vpack.c.b16 %v107, %v106
    %v140 = vunpack.c.l.b16 %v60
    %v141 = vunpack.c.l.b16 %v61
    %v142 = vunpack.c.l.b16 %v62
    %v143 = vunpack.c.l.b16 %v63
    %v144 = vunpack.c.l.b16 %v64
    %v145 = vunpack.c.l.b16 %v65
    %v146 = vunpack.c.l.b16 %v66
    %v147 = vunpack.c.l.b16 %v67
    %v148 = vunpack.c.l.b16 %v68
    %v149 = vunpack.c.l.b16 %v69
    %v150 = vunpack.c.l.b16 %v70
    %v151 = vunpack.c.l.b16 %v71
    %v152 = vunpack.c.l.b16 %v72
    %v153 = vunpack.c.l.b16 %v73
    %v154 = vunpack.c.l.b16 %v74
    %v155 = vunpack.c.l.b16 %v75
    %v156 = vpack.c.b16 %v141, %v140
    %v157 = vpack.c.b16 %v143, %v142
    %v158 = vpack.c.b16 %v145, %v144
    %v159 = vpack.c.b16 %v147, %v146
    %v160 = vpack.c.b16 %v149, %v148
    %v161 = vpack.c.b16 %v151, %v150
    %v162 = vpack.c.b16 %v153, %v152
    %v163 = vpack.c.b16 %v155, %v154
    %172 = vmatprep.subr.bf16.mxu0 0
    %173 = vmatpush1.bf16.msra.mxu0 %v163
    %174 = vmatprep.subr.bf16.mxu0 0
    %175 = vmatpush1.bf16.msra.mxu0 %v162
    %176 = vmatprep.subr.bf16.mxu0 0
    %177 = vmatpush1.bf16.msra.mxu0 %v161
    %178 = vmatprep.subr.bf16.mxu0 0
    %179 = vmatpush1.bf16.msra.mxu0 %v160
    %180 = vmatprep.subr.bf16.mxu0 0
    %181 = vmatpush1.bf16.msra.mxu0 %v159
    %182 = vmatprep.subr.bf16.mxu0 0
    %183 = vmatpush1.bf16.msra.mxu0 %v158
    %184 = vmatprep.subr.bf16.mxu0 0
    %185 = vmatpush1.bf16.msra.mxu0 %v157
    %186 = vmatprep.subr.bf16.mxu0 0
    %187 = vmatpush1.bf16.msra.mxu0 %v156
    %188 = vmatprep.subr.bf16.mxu0 0
    %189 = vmatpush2.bf16.msra.mxu0 0
    %190 = vmatprep.subr.bf16.mxu0 0
    %191 = vmatpush2.bf16.msra.mxu0 0
    %192 = vmatprep.subr.bf16.mxu0 0
    %193 = vmatpush2.bf16.msra.mxu0 0
    %194 = vmatprep.subr.bf16.mxu0 0
    %195 = vmatpush2.bf16.msra.mxu0 0
    %196 = vmatprep.subr.bf16.mxu0 0
    %197 = vmatpush2.bf16.msra.mxu0 0
    %198 = vmatprep.subr.bf16.mxu0 0
    %199 = vmatpush2.bf16.msra.mxu0 0
    %200 = vmatprep.subr.bf16.mxu0 0
    %201 = vmatpush2.bf16.msra.mxu0 0
    %202 = vmatprep.subr.bf16.mxu0 0
    %203 = vmatpush2.bf16.msra.mxu0 0
    %204 = vmatprep.mubr.bf16.mxu0 0
    %205 = vmatmul.mubr.bf16.gmra.mxu0 %v108
    %v206 = vpop.f32.mrf.mxu0
    %v207 = vadd.f32 0.0, %v206
    %v208 = vpop.f32.mrf.mxu0
    %v209 = vpop.f32.mrf.mxu0
    %v210 = vadd.f32 0.0, %v209
    %v211 = vpop.f32.mrf.mxu0
    %212 = vmatprep.mubr.bf16.mxu0 0
    %213 = vmatmul.mubr.bf16.gmra.mxu0 %v109
    %v214 = vpop.f32.mrf.mxu0
    %v215 = vadd.f32 0.0, %v214
    %v216 = vpop.f32.mrf.mxu0
    %v217 = vpop.f32.mrf.mxu0
    %v218 = vadd.f32 0.0, %v217
    %v219 = vpop.f32.mrf.mxu0
    %220 = vmatprep.mubr.bf16.mxu0 0
    %221 = vmatmul.mubr.bf16.gmra.mxu0 %v110
    %v222 = vpop.f32.mrf.mxu0
    %v223 = vadd.f32 0.0, %v222
    %v224 = vpop.f32.mrf.mxu0
    %v225 = vpop.f32.mrf.mxu0
    %v226 = vadd.f32 0.0, %v225
    %v227 = vpop.f32.mrf.mxu0
    %228 = vmatprep.mubr.bf16.mxu0 0
    %229 = vmatmul.mubr.bf16.gmra.mxu0 %v111
    %v230 = vpop.f32.mrf.mxu0
    %v231 = vadd.f32 0.0, %v230
    %v232 = vpop.f32.mrf.mxu0
    %v233 = vpop.f32.mrf.mxu0
    %v234 = vadd.f32 0.0, %v233
    %v235 = vpop.f32.mrf.mxu0
    %236 = vmatprep.mubr.bf16.mxu0 0
    %237 = vmatmul.mubr.bf16.gmra.mxu0 %v112
    %v238 = vpop.f32.mrf.mxu0
    %v239 = vadd.f32 0.0, %v238
    %v240 = vpop.f32.mrf.mxu0
    %v241 = vpop.f32.mrf.mxu0
    %v242 = vadd.f32 0.0, %v241
    %v243 = vpop.f32.mrf.mxu0
    %244 = vmatprep.mubr.bf16.mxu0 0
    %245 = vmatmul.mubr.bf16.gmra.mxu0 %v113
    %v246 = vpop.f32.mrf.mxu0
    %v247 = vadd.f32 0.0, %v246
    %v248 = vpop.f32.mrf.mxu0
    %v249 = vpop.f32.mrf.mxu0
    %v250 = vadd.f32 0.0, %v249
    %v251 = vpop.f32.mrf.mxu0
    %252 = vmatprep.mubr.bf16.mxu0 0
    %253 = vmatmul.mubr.bf16.gmra.mxu0 %v114
    %v254 = vpop.f32.mrf.mxu0
    %v255 = vadd.f32 0.0, %v254
    %v256 = vpop.f32.mrf.mxu0
    %v257 = vpop.f32.mrf.mxu0
    %v258 = vadd.f32 0.0, %v257
    %v259 = vpop.f32.mrf.mxu0
    %260 = vmatprep.mubr.bf16.mxu0 0
    %261 = vmatmul.mubr.bf16.gmra.mxu0 %v115
    %v262 = vpop.f32.mrf.mxu0
    %v263 = vadd.f32 0.0, %v262
    %v264 = vpop.f32.mrf.mxu0
    %v265 = vpop.f32.mrf.mxu0
    %v266 = vadd.f32 0.0, %v265
    %v267 = vpop.f32.mrf.mxu0
    %268 = vdwg.mxu0
    %v269 = vpack.c.bf16 %v210, %v207
    %v270 = vpack.c.bf16 %v218, %v215
    %v271 = vpack.c.bf16 %v226, %v223
    %v272 = vpack.c.bf16 %v234, %v231
    %v273 = vpack.c.bf16 %v242, %v239
    %v274 = vpack.c.bf16 %v250, %v247
    %v275 = vpack.c.bf16 %v258, %v255
    %v276 = vpack.c.bf16 %v266, %v263
    %v285 = vunpack.c.l.b16 %v269
    %v286 = vunpack.c.h.b16 %v269
    %v287 = vunpack.c.l.b16 %v270
    %v288 = vunpack.c.h.b16 %v270
    %v289 = vunpack.c.l.b16 %v271
    %v290 = vunpack.c.h.b16 %v271
    %v291 = vunpack.c.l.b16 %v272
    %v292 = vunpack.c.h.b16 %v272
    %v293 = vunpack.c.l.b16 %v273
    %v294 = vunpack.c.h.b16 %v273
    %v295 = vunpack.c.l.b16 %v274
    %v296 = vunpack.c.h.b16 %v274
    %v297 = vunpack.c.l.b16 %v275
    %v298 = vunpack.c.h.b16 %v275
    %v299 = vunpack.c.l.b16 %v276
    %v300 = vunpack.c.h.b16 %v276
    %v301 = vpack.c.b16 %v285, %v285
    %v302 = vpack.c.b16 %v286, %v286
    %v303 = vpack.c.b16 %v287, %v287
    %v304 = vpack.c.b16 %v288, %v288
    %v305 = vpack.c.b16 %v289, %v289
    %v306 = vpack.c.b16 %v290, %v290
    %v307 = vpack.c.b16 %v291, %v291
    %v308 = vpack.c.b16 %v292, %v292
    %v309 = vpack.c.b16 %v293, %v293
    %v310 = vpack.c.b16 %v294, %v294
    %v311 = vpack.c.b16 %v295, %v295
    %v312 = vpack.c.b16 %v296, %v296
    %v313 = vpack.c.b16 %v297, %v297
    %v314 = vpack.c.b16 %v298, %v298
    %v315 = vpack.c.b16 %v299, %v299
    %v316 = vpack.c.b16 %v300, %v300
    %333 = vst [vmem:[#allocation7] sm:$0xf] %v301
    %334 = vst [vmem:[#allocation7 + $0x4] sm:$0xf] %v302
    %335 = vst [vmem:[#allocation7 + $0x8] sm:$0xf] %v303
    %336 = vst [vmem:[#allocation7 + $0xc] sm:$0xf] %v304
    %337 = vst [vmem:[#allocation7 + $0x10] sm:$0xf] %v305
    %338 = vst [vmem:[#allocation7 + $0x14] sm:$0xf] %v306
    %339 = vst [vmem:[#allocation7 + $0x18] sm:$0xf] %v307
    %340 = vst [vmem:[#allocation7 + $0x1c] sm:$0xf] %v308
    %341 = vst [vmem:[#allocation7 + $0x20] sm:$0xf] %v309
    %342 = vst [vmem:[#allocation7 + $0x24] sm:$0xf] %v310
    %343 = vst [vmem:[#allocation7 + $0x28] sm:$0xf] %v311
    %344 = vst [vmem:[#allocation7 + $0x2c] sm:$0xf] %v312
    %345 = vst [vmem:[#allocation7 + $0x30] sm:$0xf] %v313
    %346 = vst [vmem:[#allocation7 + $0x34] sm:$0xf] %v314
    %347 = vst [vmem:[#allocation7 + $0x38] sm:$0xf] %v315
    %348 = vst [vmem:[#allocation7 + $0x3c] sm:$0xf] %v316
    %v349 = vadd.f32 %v207, %v210
    %v350 = vadd.f32 %v349, %v215
    %v351 = vadd.f32 %v350, %v218
    %v352 = vadd.f32 %v351, %v223
    %v353 = vadd.f32 %v352, %v226
    %v354 = vadd.f32 %v353, %v231
    %v355 = vadd.f32 %v354, %v234
    %v356 = vadd.f32 %v355, %v239
    %v357 = vadd.f32 %v356, %v242
    %v358 = vadd.f32 %v357, %v247
    %v359 = vadd.f32 %v358, %v250
    %v360 = vadd.f32 %v359, %v255
    %v361 = vadd.f32 %v360, %v258
    %v362 = vadd.f32 %v361, %v263
    %v363 = vadd.f32 %v362, %v266
    %v364 = vrot.slane %v363, 4
    %v365 = vadd.f32 %v363, %v364
    %v366 = vrot.slane %v365, 2
    %v367 = vadd.f32 %v365, %v366
    %v368 = vrot.slane %v367, 1
    %v369 = vadd.f32 %v367, %v368
    %v370 = vmul.f32 %v207, %v207
    %v371 = vmul.f32 %v210, %v210
    %v372 = vmul.f32 %v215, %v215
    %v373 = vmul.f32 %v218, %v218
    %v374 = vmul.f32 %v223, %v223
    %v375 = vmul.f32 %v226, %v226
    %v376 = vmul.f32 %v231, %v231
    %v377 = vmul.f32 %v234, %v234
    %v378 = vmul.f32 %v239, %v239
    %v379 = vmul.f32 %v242, %v242
    %v380 = vmul.f32 %v247, %v247
    %v381 = vmul.f32 %v250, %v250
    %v382 = vmul.f32 %v255, %v255
    %v383 = vmul.f32 %v258, %v258
    %v384 = vmul.f32 %v263, %v263
    %v385 = vmul.f32 %v266, %v266
    %v386 = vadd.f32 %v370, %v371
    %v387 = vadd.f32 %v386, %v372
    %v388 = vadd.f32 %v387, %v373
    %v389 = vadd.f32 %v388, %v374
    %v390 = vadd.f32 %v389, %v375
    %v391 = vadd.f32 %v390, %v376
    %v392 = vadd.f32 %v391, %v377
    %v393 = vadd.f32 %v392, %v378
    %v394 = vadd.f32 %v393, %v379
    %v395 = vadd.f32 %v394, %v380
    %v396 = vadd.f32 %v395, %v381
    %v397 = vadd.f32 %v396, %v382
    %v398 = vadd.f32 %v397, %v383
    %v399 = vadd.f32 %v398, %v384
    %v400 = vadd.f32 %v399, %v385
    %v401 = vrot.slane %v400, 4
    %v402 = vadd.f32 %v400, %v401
    %v403 = vrot.slane %v402, 2
    %v404 = vadd.f32 %v402, %v403
    %v405 = vrot.slane %v404, 1
    %v406 = vadd.f32 %v404, %v405
    %v407 = vlaneseq
    %v408 = vshrl.u32 %v407, 7
    %vm409 = vcmp.eq.s32.totalorder %v408, 0
    %vm410 = vcmp.eq.s32.totalorder %v408, 1
    %v411 = vsel %vm410, %v406, 0.0
    %v412 = vsel %vm409, %v369, %v411
    %413 = vst [vmem:[#allocation8] sm:$0xff] %v412
    // Predicated region
    $region18: #{tpu_custom_call.1} parent=1 // pred_check
      _
    $region19: #{tpu_custom_call.1} parent=1 // pred_check_branch
      %415 = sbr.rel (0) target = $region21
    $region20: #{tpu_custom_call.1} parent=1 // pred_region
      %s417 = ssub.s32 1024, 1024
      %418 = vsyncadd [#allocation4], %s417
      %s419 = sshll.u32 [#allocation7], 4
      %s420 = int_to_ptr.vmem [resolvable:$true] %s419
      %425 = dma.vmem_to_hbm [thread:$0]  %s420, 1024, %s2, [#allocation4], 64, 64, 4
    $region21: #{tpu_custom_call.1} parent=1 // pred_fallthru
      _
    // Predicated region
    $region22: #{tpu_custom_call.1} parent=1 // pred_check
      _
    $region23: #{tpu_custom_call.1} parent=1 // pred_check_branch
      %427 = sbr.rel (0) target = $region25
    $region24: #{tpu_custom_call.1} parent=1 // pred_region
      %s429 = ssub.s32 128, 128
      %430 = vsyncadd [#allocation9], %s429
      %s432 = sshll.u32 [#allocation8], 4
      %s433 = int_to_ptr.vmem [resolvable:$true] %s432
      %435 = dma.vmem_to_hbm [thread:$0]  %s433, 128, %s3, [#allocation9]
    $region25: #{tpu_custom_call.1} parent=1 // pred_fallthru
      _
    // Predicated region
    $region26: #{tpu_custom_call.1} parent=1 // pred_check
      _
    $region27: #{tpu_custom_call.1} parent=1 // pred_check_branch
      %437 = sbr.rel (0) target = $region29
    $region28: #{tpu_custom_call.1} parent=1 // pred_region
      %438 = dma.done [#allocation4], 1024
    $region29: #{tpu_custom_call.1} parent=1 // pred_fallthru
      _
    // Predicated region
    $region30: #{tpu_custom_call.1} parent=1 // pred_check
      _
    $region31: #{tpu_custom_call.1} parent=1 // pred_check_branch
      %440 = sbr.rel (0) target = $region33
    $region32: #{tpu_custom_call.1} parent=1 // pred_region
      %441 = dma.done [#allocation9], 128
    $region33: #{tpu_custom_call.1} parent=1 // pred_fallthru
      _
    %442 = vsyncpa [#allocation3], 1
    %443 = vsyncpa [#allocation6], 1
    %444 = vsyncpa [#allocation4], 1
    %445 = vsyncpa [#allocation9], 1

</llo_original>
